<compile_context>
chip_gen: v6e
topology: v6e:2x2x1
jax: 0.10.0
libtpu: 0.0.40
codegen_flags: <defaults>
</compile_context>

<pallas_src>
import math

import jax
import jax.numpy as jnp
import numpy as np
from jax.experimental import pallas as pl
from jax.experimental.pallas import tpu as pltpu


def patch_embedding_kernel(p_ref, w_ref, pe_ref, o_ref):
    # p_ref:  (tb*P, patch_len)  flattened patches for tb series
    # w_ref:  (patch_len, D)     value_embedding weight, transposed
    # pe_ref: (tb*P, D)          positional-encoding rows, tiled to the block (constant block)
    # o_ref:  (tb*P, D)
    acc = jnp.dot(p_ref[...], w_ref[...], preferred_element_type=jnp.float32)  # one MXU push
    o_ref[...] = (acc + pe_ref[...]).astype(o_ref.dtype)


def _sinusoidal_pe(P, d_model):
    pos = jnp.arange(P, dtype=jnp.float32)[:, None]
    div = jnp.exp(jnp.arange(0, d_model, 2, dtype=jnp.float32)
                  * -(math.log(10000.0) / d_model))
    pe = jnp.zeros((P, d_model), jnp.float32)
    pe = pe.at[:, 0::2].set(jnp.sin(pos * div))
    pe = pe.at[:, 1::2].set(jnp.cos(pos * div))
    return pe


def patch_embedding(x, weight, *, patch_len, stride, padding,
                    tb=None, compute_dtype=jnp.float32):
    """x: (B, n_vars, L) f32, weight: (d_model, patch_len) f32.
    Returns (out (B*n_vars, P, d_model) f32, n_vars) matching the PyTorch forward (eval)."""
    B, n_vars, L = x.shape
    d_model, w_plen = weight.shape
    assert w_plen == patch_len, "weight must be (d_model, patch_len)"
    assert d_model % 2 == 0, "sinusoidal PE requires even d_model"

    L_pad = L + padding
    P = (L_pad - patch_len) // stride + 1
    BN = B * n_vars

    # ---- wrapper-side layout plumbing (zero FLOPs) -------------------------------------------
    # ReplicationPad1d((0, padding)) + unfold(size=patch_len, step=stride) -> flat patch rows.
    if padding > 0:
        x_pad = jnp.concatenate([x, jnp.repeat(x[:, :, -1:], padding, axis=-1)], axis=-1)
    else:
        x_pad = x
    win = jnp.arange(P)[:, None] * stride + jnp.arange(patch_len)[None, :]      # (P, patch_len)
    patches = x_pad[:, :, win].reshape(BN * P, patch_len).astype(compute_dtype)
    w_t = weight.T.astype(compute_dtype)                                          # (patch_len, D)

    # Fixed sinusoidal positional table (registered buffer in PyTorch) -> no in-kernel EUP.
    pe = _sinusoidal_pe(P, d_model)

    # ---- tiling: tb whole series per grid step -------------------------------------------------
    if tb is None:
        # ~2 MiB f32 output tile per step, but keep >= 2 grid steps when possible (two v7x
        # TensorCores; multiple steps also fill the software pipeline).
        tb = max(1, min(BN, (2 << 20) // max(1, P * d_model * 4)))
        if BN >= 2:
            tb = min(tb, max(1, BN // 2))
        while BN % tb != 0:
            tb -= 1
    assert BN % tb == 0, "tb must divide B * n_vars"
    if (tb * P) % 8 != 0 and tb != BN:
        tb = BN  # single full block: sublane dim equals the full array extent, always legal

    rows = tb * P
    pe_tiled = jnp.tile(pe, (tb, 1))                                               # (tb*P, D)

    itemsize = jnp.dtype(compute_dtype).itemsize
    cost = pl.CostEstimate(
        flops=2 * BN * P * patch_len * d_model,
        transcendentals=0,
        bytes_accessed=(BN * P * patch_len * itemsize          # patches
                        + patch_len * d_model * itemsize       # weight (resident)
                        + rows * d_model * 4                   # PE block (resident)
                        + BN * P * d_model * 4),               # output
    )

    out2d = pl.pallas_call(
        patch_embedding_kernel,
        out_shape=jax.ShapeDtypeStruct((BN * P, d_model), jnp.float32),
        grid_spec=pltpu.PrefetchScalarGridSpec(
            num_scalar_prefetch=0,
            grid=(BN // tb,),
            in_specs=[
                pl.BlockSpec((rows, patch_len), lambda i: (i, 0)),
                pl.BlockSpec((patch_len, d_model), lambda i: (0, 0)),
                pl.BlockSpec((rows, d_model), lambda i: (0, 0)),
            ],
            out_specs=pl.BlockSpec((rows, d_model), lambda i: (i, 0)),
        ),
        compiler_params=pltpu.CompilerParams(dimension_semantics=("parallel",)),
        cost_estimate=cost,
    )(patches, w_t, pe_tiled)

    return out2d.reshape(BN, P, d_model), n_vars


def _reference(x, weight, patch_len, stride, padding):
    """Pure-JAX reference mirroring the PyTorch forward (eval mode)."""
    B, n_vars, L = x.shape
    d_model = weight.shape[0]
    x_pad = jnp.concatenate([x] + [x[:, :, -1:]] * padding, axis=-1) if padding > 0 else x
    L_pad = L + padding
    P = (L_pad - patch_len) // stride + 1
    patches = jnp.stack([x_pad[:, :, p * stride:p * stride + patch_len] for p in range(P)],
                        axis=2)                                                    # (B,nv,P,pl)
    patches = patches.reshape(B * n_vars, P, patch_len)
    val = patches @ weight.T
    pe = _sinusoidal_pe(P, d_model)
    return val + pe[None], n_vars


if __name__ == "__main__":
    B, N_VARS, L = 4, 4, 32
    PATCH_LEN, STRIDE, PADDING = 16, 8, 8
    D_MODEL = 128          # multiple of 128 -> lane-dense output stores

    key = jax.random.PRNGKey(0)
    kx, kw = jax.random.split(key)
    x = jax.random.normal(kx, (B, N_VARS, L), dtype=jnp.float32)

    # nn.Linear(patch_len, d_model, bias=False) weight: (d_model, patch_len)
    bound = 1.0 / math.sqrt(PATCH_LEN)
    weight = jax.random.uniform(kw, (D_MODEL, PATCH_LEN), jnp.float32, -bound, bound)

    out, n_vars = patch_embedding(x, weight, patch_len=PATCH_LEN, stride=STRIDE, padding=PADDING)
    out = jax.block_until_ready(out)

    ref, n_vars_ref = _reference(x, weight, PATCH_LEN, STRIDE, PADDING)
    P = (L + PADDING - PATCH_LEN) // STRIDE + 1
    assert out.shape == (B * N_VARS, P, D_MODEL)
    assert n_vars == n_vars_ref == N_VARS
    np.testing.assert_allclose(np.asarray(out), np.asarray(ref), rtol=1e-5, atol=1e-4)

    print("KERNEL_OK")
</pallas_src>

<mosaic_0001>
module attributes {stable_mosaic.version = 11 : i64} {
  func.func @patch_embedding_kernel(%arg0: i32, %arg1: memref<32x16xf32, #tpu.memory_space<vmem>>, %arg2: memref<16x128xf32, #tpu.memory_space<vmem>>, %arg3: memref<32x128xf32, #tpu.memory_space<vmem>>, %arg4: memref<32x128xf32, #tpu.memory_space<vmem>>) attributes {dimension_semantics = [#tpu.dimension_semantics<parallel>], iteration_bounds = array<i64: 2>, scalar_prefetch = 0 : i64, scratch_operands = 0 : i64, tpu.core_type = #tpu.core_type<tc>, window_params = [{transform_indices = @transform_0, window_bounds = array<i64: 32, 16>}, {pipeline_mode = #tpu.pipeline_mode<synchronous>, transform_indices = @transform_1, window_bounds = array<i64: 16, 128>}, {pipeline_mode = #tpu.pipeline_mode<synchronous>, transform_indices = @transform_2, window_bounds = array<i64: 32, 128>}, {transform_indices = @transform_3, window_bounds = array<i64: 32, 128>}]} {
    %c0 = arith.constant 0 : index
    %c0_0 = arith.constant 0 : index
    %0 = vector.load %arg1[%c0, %c0_0] : memref<32x16xf32, #tpu.memory_space<vmem>>, vector<32x16xf32>
    %c0_1 = arith.constant 0 : index
    %c0_2 = arith.constant 0 : index
    %1 = vector.load %arg2[%c0_1, %c0_2] : memref<16x128xf32, #tpu.memory_space<vmem>>, vector<16x128xf32>
    %cst = arith.constant dense<0.000000e+00> : vector<32x128xf32>
    %2 = tpu.matmul %0, %1, %cst {dimension_numbers = #tpu.dot_dimension_numbers<[1], [0], [0], [1], [0, 0, 1, 1], [], []>} : vector<32x16xf32>, vector<16x128xf32>, vector<32x128xf32> -> vector<32x128xf32>
    %c0_3 = arith.constant 0 : index
    %c0_4 = arith.constant 0 : index
    %3 = vector.load %arg3[%c0_3, %c0_4] : memref<32x128xf32, #tpu.memory_space<vmem>>, vector<32x128xf32>
    %4 = arith.addf %2, %3 : vector<32x128xf32>
    %c0_5 = arith.constant 0 : index
    %c0_6 = arith.constant 0 : index
    %5 = vector.load %arg4[%c0_5, %c0_6] : memref<32x128xf32, #tpu.memory_space<vmem>>, vector<32x128xf32>
    tpu.vector_store %arg4[%c0_5, %c0_6], %4 {strides = array<i32>} : memref<32x128xf32, #tpu.memory_space<vmem>>, vector<32x128xf32>,
    return
  }
  func.func @transform_0(%arg0: i32) -> (i32, i32) {
    %c0_i32 = arith.constant 0 : i32
    %c0_i32_0 = arith.constant 0 : i32
    return %arg0, %c0_i32 : i32, i32
  }
  func.func @transform_1(%arg0: i32) -> (i32, i32) {
    %c0_i32 = arith.constant 0 : i32
    %c0_i32_0 = arith.constant 0 : i32
    %c0_i32_1 = arith.constant 0 : i32
    return %c0_i32, %c0_i32_0 : i32, i32
  }
  func.func @transform_2(%arg0: i32) -> (i32, i32) {
    %c0_i32 = arith.constant 0 : i32
    %c0_i32_0 = arith.constant 0 : i32
    %c0_i32_1 = arith.constant 0 : i32
    return %c0_i32, %c0_i32_0 : i32, i32
  }
  func.func @transform_3(%arg0: i32) -> (i32, i32) {
    %c0_i32 = arith.constant 0 : i32
    %c0_i32_0 = arith.constant 0 : i32
    return %arg0, %c0_i32 : i32, i32
  }
}

</mosaic_0001>

<llo_original>
// kernel: tpu_custom_call.1
$region0: #{tpu_custom_call.1}
  #allocation0 [shape = 'u32[]', space=smem, size = 0x4, offset = 0x4, fixed_abs, tag = 'smem constant byte address 0x4 - core index']
  #allocation1 [shape = 'u32[144,128]{1,0:T(1,128)}', space=vmem, size = 0x12000, scoped, tag = 'internal scratch']
  %s0 = inlined_call_operand.vmem [shape: f32[64,16], index: 0, kind: input, shape index: {}]
  %s1 = inlined_call_operand.vmem [shape: f32[16,128], index: 1, kind: input, shape index: {}]
  %s2 = inlined_call_operand.vmem [shape: f32[32,128], index: 2, kind: input, shape index: {}]
  %s3 = inlined_call_operand.hbm [shape: f32[64,128], index: 3, kind: output, shape index: {}]
  %s4 = sld [smem:[#allocation0]]
  $region45: #{tpu_custom_call.1} parent=0
    _
  %s6 = ssub.s32 1, %s4
  %s7 = scalar_select 0, %s6, %s4
  $region1: #{tpu_custom_call.1} parent=0
    #allocation2 [shape = 'u8[32768]{0}', space=vmem, size = 0x8000, scoped, tag = 'output window, operand 0']
    #allocation3 [shape = 's32[2]{0}', space=sflag, size = 0x8, scoped, tag = 'scoped memory for tpu_custom_call.1']
    %8 = vsyncpa [#allocation3], 0
    %s9 = scalar_lea.sflag [#allocation3], 1
    %10 = vsyncpa %s9, 0
    loop: start=0, step=1, limit=4
    $region2: #{tpu_custom_call.1} parent=1 // loop_pre_header
      _
    $region3: #{tpu_custom_call.1} parent=1 // loop_header
      %s12 = sphi 0, %s16
      %p13 = scmp.ge.s32.totalorder %s12, 4
      %s22 = sphi 0, %s24
      %s25 = sphi 0, %s22
      %s26 = sphi 0, %s25
      %s42 = sphi 0, %s26
      %s46 = sphi 0, %s46
      %s48 = sphi 0, %s46
      %s49 = sphi 0, %s48
      %s63 = sphi 0, %s49
      %s67 = sphi 0, %s67
      %s69 = sphi 0, %s67
      %s70 = sphi 0, %s69
      %s84 = sphi 0, %s70
      %s90 = sphi 0, %s92
      %s93 = sphi 0, %s90
      %s94 = sphi 0, %s93
      %s110 = sphi 0, %s94
    $region4: #{tpu_custom_call.1} parent=1 // loop_header_branch
      %15 = sbr.rel (%p13) target = $region8
    $region5: #{tpu_custom_call.1} parent=1 // loop_body
      %s17 = ssub.s32 %s12, 1
      %s18 = ssub.s32 %s12, 2
      %s19 = sadd.s32 %s12, 1
      %s20 = ssub.s32 %s12, %s19
      %p21 = scmp.eq.s32.totalorder %s20, 0
      %s23 = sadd.s32 %s22, 1
      %s24 = scalar_select %p21, %s22, %s23
      %p27 = pneg %p21
      %p28 = scmp.eq.s32.totalorder %s12, 1
      %p29 = por %p27, %p28
      %p30 = scmp.ne.s32.totalorder %s22, %s25
      %p31 = scmp.eq.s32.totalorder %s12, 0
      %p32 = por %p30, %p31
      %p33 = scmp.ne.s32.totalorder %s22, %s25
      %p34 = scmp.eq.s32.totalorder %s17, 1
      %p35 = por %p33, %p34
      %p36 = scmp.ne.s32.totalorder %s25, %s26
      %p37 = scmp.eq.s32.totalorder %s17, 0
      %p38 = por %p36, %p37
      %p39 = scmp.ne.s32.totalorder %s25, %s26
      %p40 = scmp.eq.s32.totalorder %s18, 1
      %p41 = por %p39, %p40
      %p43 = scmp.ne.s32.totalorder %s26, %s42
      %p44 = scmp.eq.s32.totalorder %s18, 0
      %p45 = por %p43, %p44
      %s47 = sadd.s32 %s46, 1
      %p50 = scmp.eq.s32.totalorder %s12, 1
      %p51 = scmp.ne.s32.totalorder %s46, %s48
      %p52 = scmp.eq.s32.totalorder %s12, 0
      %p53 = por %p51, %p52
      %p54 = scmp.ne.s32.totalorder %s46, %s48
      %p55 = scmp.eq.s32.totalorder %s17, 1
      %p56 = por %p54, %p55
      %p57 = scmp.ne.s32.totalorder %s48, %s49
      %p58 = scmp.eq.s32.totalorder %s17, 0
      %p59 = por %p57, %p58
      %p60 = scmp.ne.s32.totalorder %s48, %s49
      %p61 = scmp.eq.s32.totalorder %s18, 1
      %p62 = por %p60, %p61
      %p64 = scmp.ne.s32.totalorder %s49, %s63
      %p65 = scmp.eq.s32.totalorder %s18, 0
      %p66 = por %p64, %p65
      %s68 = sadd.s32 %s67, 1
      %p71 = scmp.eq.s32.totalorder %s12, 1
      %p72 = scmp.ne.s32.totalorder %s67, %s69
      %p73 = scmp.eq.s32.totalorder %s12, 0
      %p74 = por %p72, %p73
      %p75 = scmp.ne.s32.totalorder %s67, %s69
      %p76 = scmp.eq.s32.totalorder %s17, 1
      %p77 = por %p75, %p76
      %p78 = scmp.ne.s32.totalorder %s69, %s70
      %p79 = scmp.eq.s32.totalorder %s17, 0
      %p80 = por %p78, %p79
      %p81 = scmp.ne.s32.totalorder %s69, %s70
      %p82 = scmp.eq.s32.totalorder %s18, 1
      %p83 = por %p81, %p82
      %p85 = scmp.ne.s32.totalorder %s70, %s84
      %p86 = scmp.eq.s32.totalorder %s18, 0
      %p87 = por %p85, %p86
      %s88 = ssub.s32 %s12, %s19
      %p89 = scmp.eq.s32.totalorder %s88, 0
      %s91 = sadd.s32 %s90, 1
      %s92 = scalar_select %p89, %s90, %s91
      %p95 = pneg %p89
      %p96 = scmp.eq.s32.totalorder %s12, 1
      %p97 = por %p95, %p96
      %p98 = scmp.ne.s32.totalorder %s90, %s93
      %p99 = scmp.eq.s32.totalorder %s12, 0
      %p100 = por %p98, %p99
      %p101 = scmp.ne.s32.totalorder %s90, %s93
      %p102 = scmp.eq.s32.totalorder %s17, 1
      %p103 = por %p101, %p102
      %p104 = scmp.ne.s32.totalorder %s93, %s94
      %p105 = scmp.eq.s32.totalorder %s17, 0
      %p106 = por %p104, %p105
      %p107 = scmp.ne.s32.totalorder %s93, %s94
      %p108 = scmp.eq.s32.totalorder %s18, 1
      %p109 = por %p107, %p108
      %p111 = scmp.ne.s32.totalorder %s94, %s110
      %p112 = scmp.eq.s32.totalorder %s18, 0
      %p113 = por %p111, %p112
      %p114 = scmp.le.s32.totalorder 1, %s12
      %p115 = scmp.lt.s32.totalorder %s12, 3
      %p116 = pnand %p114, %p115
      %p117 = pneg %p116
      // Predicated region
      $region9: #{tpu_custom_call.1} parent=5 // pred_check
        _
      $region10: #{tpu_custom_call.1} parent=5 // pred_check_branch
        %119 = sbr.rel (%p116) target = $region12
      $region11: #{tpu_custom_call.1} parent=5 // pred_region
        %s120 = ssub.s32 %s12, 1
        // Predicated region
        $region13: #{tpu_custom_call.1} parent=11 // pred_check
          %p121 = pneg %p59
        $region14: #{tpu_custom_call.1} parent=11 // pred_check_branch
          %123 = sbr.rel (%p121) target = $region16
        $region15: #{tpu_custom_call.1} parent=11 // pred_region
          _
        $region16: #{tpu_custom_call.1} parent=11 // pred_fallthru
          _
        // Predicated region
        $region17: #{tpu_custom_call.1} parent=11 // pred_check
          %p124 = pneg %p80
        $region18: #{tpu_custom_call.1} parent=11 // pred_check_branch
          %126 = sbr.rel (%p124) target = $region20
        $region19: #{tpu_custom_call.1} parent=11 // pred_region
          _
        $region20: #{tpu_custom_call.1} parent=11 // pred_fallthru
          _
      $region12: #{tpu_custom_call.1} parent=5 // pred_fallthru
        _
      %p127 = scmp.lt.s32.totalorder %s12, 2
      // Predicated region
      $region21: #{tpu_custom_call.1} parent=5 // pred_check
        %p128 = pneg %p127
      $region22: #{tpu_custom_call.1} parent=5 // pred_check_branch
        %130 = sbr.rel (%p128) target = $region24
      $region23: #{tpu_custom_call.1} parent=5 // pred_region
        // Predicated region
        $region25: #{tpu_custom_call.1} parent=23 // pred_check
          %p131 = pneg %p32
        $region26: #{tpu_custom_call.1} parent=23 // pred_check_branch
          %133 = sbr.rel (%p131) target = $region28
        $region27: #{tpu_custom_call.1} parent=23 // pred_region
          %s134 = smul.u32 4, %s12
          %p135 = scmp.lt.s32.totalorder %s134, 7
          %s136 = scalar_select %p135, %s134, 7
          %s137 = smul.addr %s136, 8
          %s138 = scalar_lea.vmem %s0, %s137
          %s139 = smul.u32 4, %s12
        $region28: #{tpu_custom_call.1} parent=23 // pred_fallthru
          _
      $region24: #{tpu_custom_call.1} parent=5 // pred_fallthru
        _
      %p140 = scmp.le.s32.totalorder 1, %s12
      %p141 = scmp.lt.s32.totalorder %s12, 3
      %p142 = pnand %p140, %p141
      %p143 = pneg %p142
      // Predicated region
      $region29: #{tpu_custom_call.1} parent=5 // pred_check
        _
      $region30: #{tpu_custom_call.1} parent=5 // pred_check_branch
        %145 = sbr.rel (%p142) target = $region32
      $region31: #{tpu_custom_call.1} parent=5 // pred_region
        %s146 = ssub.s32 %s12, 1
        %s147 = smul.u32 4, %s17
        %p148 = scmp.lt.s32.totalorder %s147, 7
        %s149 = scalar_select %p148, %s147, 7
        %s150 = smul.addr %s149, 8
        %s151 = scalar_lea.vmem %s0, %s150
        %p152 = pneg %p38
        %p153 = pneg %p35
        %p154 = pneg %p59
        %p155 = pneg %p56
        %p156 = pneg %p80
        %p157 = pneg %p77
        %p158 = pneg %p106
        %p159 = pneg %p103
        %s160 = sand.u32 %s93, 1
        %s161 = scalar_lea.sflag [#allocation3], %s160
        %s162 = sand.u32 %s93, 1
        %s163 = smul.addr %s162, 32
        %s164 = scalar_lea.vmem [#allocation2], %s163
        %s165 = smul.u32 4, %s17
        %p166 = scmp.lt.s32.totalorder %s165, 7
        %s167 = scalar_select %p166, %s165, 7
        %s168 = smul.addr %s167, 8
        %s169 = scalar_lea.vmem %s0, %s168
        %s170 = smul.u32 4, %s17
        %s171 = smul.u32 4, %s17
        %v172 = vld [vmem:[%s169] sm:$0xff]
        %v173 = vld [vmem:[%s169 + $0x8] sm:$0xff]
        %v174 = vld [vmem:[%s169 + $0x10] sm:$0xff]
        %v175 = vld [vmem:[%s169 + $0x18] sm:$0xff]
        %v176 = vld [vmem:[%s1] sm:$0xff]
        %v177 = vld [vmem:[%s1 + $0x8] sm:$0xff]
        %v178 = vld [vmem:[%s2] sm:$0xff]
        %v179 = vld [vmem:[%s2 + $0x8] sm:$0xff]
        %v180 = vld [vmem:[%s2 + $0x10] sm:$0xff]
        %v181 = vld [vmem:[%s2 + $0x18] sm:$0xff]
        %vm182 = vcmask 130048
        %v184 = vsel %vm182, %v172, 0
        %v187 = vsel %vm182, %v173, 0
        %v190 = vsel %vm182, %v174, 0
        %v193 = vsel %vm182, %v175, 0
        %195 = vmatprep.subr.mxu0 0.0
        %196 = vmatpush1.msra.mxu0 0.0
        %197 = vmatprep.subr.mxu0 0.0
        %198 = vmatpush1.msra.mxu0 0.0
        %199 = vmatprep.subr.mxu0 0.0
        %200 = vmatpush1.msra.mxu0 0.0
        %201 = vmatprep.subr.mxu0 0.0
        %202 = vmatpush1.msra.mxu0 0.0
        %203 = vmatprep.subr.mxu0 0.0
        %204 = vmatpush1.msra.mxu0 0.0
        %205 = vmatprep.subr.mxu0 0.0
        %206 = vmatpush1.msra.mxu0 0.0
        %207 = vmatprep.subr.mxu0 0.0
        %208 = vmatpush1.msra.mxu0 0.0
        %209 = vmatprep.subr.mxu0 0.0
        %210 = vmatpush1.msra.mxu0 0.0
        %211 = vmatprep.subr.mxu0 0.0
        %212 = vmatpush1.msra.mxu0 0.0
        %213 = vmatprep.subr.mxu0 0.0
        %214 = vmatpush1.msra.mxu0 0.0
        %215 = vmatprep.subr.mxu0 0.0
        %216 = vmatpush1.msra.mxu0 0.0
        %217 = vmatprep.subr.mxu0 0.0
        %218 = vmatpush1.msra.mxu0 0.0
        %219 = vmatprep.subr.mxu0 0.0
        %220 = vmatpush1.msra.mxu0 0.0
        %221 = vmatprep.subr.mxu0 0.0
        %222 = vmatpush1.msra.mxu0 0.0
        %223 = vmatprep.subr.mxu0 0.0
        %224 = vmatpush1.msra.mxu0 %v177
        %225 = vmatprep.subr.mxu0 0.0
        %226 = vmatpush1.msra.mxu0 %v176
        %227 = vmatprep.subr.mxu0 0.0
        %228 = vmatpush2.msra.mxu0 0.0
        %229 = vmatprep.subr.mxu0 0.0
        %230 = vmatpush2.msra.mxu0 0.0
        %231 = vmatprep.subr.mxu0 0.0
        %232 = vmatpush2.msra.mxu0 0.0
        %233 = vmatprep.subr.mxu0 0.0
        %234 = vmatpush2.msra.mxu0 0.0
        %235 = vmatprep.subr.mxu0 0.0
        %236 = vmatpush2.msra.mxu0 0.0
        %237 = vmatprep.subr.mxu0 0.0
        %238 = vmatpush2.msra.mxu0 0.0
        %239 = vmatprep.subr.mxu0 0.0
        %240 = vmatpush2.msra.mxu0 0.0
        %241 = vmatprep.subr.mxu0 0.0
        %242 = vmatpush2.msra.mxu0 0.0
        %243 = vmatprep.subr.mxu0 0.0
        %244 = vmatpush2.msra.mxu0 0.0
        %245 = vmatprep.subr.mxu0 0.0
        %246 = vmatpush2.msra.mxu0 0.0
        %247 = vmatprep.subr.mxu0 0.0
        %248 = vmatpush2.msra.mxu0 0.0
        %249 = vmatprep.subr.mxu0 0.0
        %250 = vmatpush2.msra.mxu0 0.0
        %251 = vmatprep.subr.mxu0 0.0
        %252 = vmatpush2.msra.mxu0 0.0
        %253 = vmatprep.subr.mxu0 0.0
        %254 = vmatpush2.msra.mxu0 0.0
        %255 = vmatprep.subr.mxu0 0.0
        %256 = vmatpush2.msra.mxu0 0.0
        %257 = vmatprep.subr.mxu0 0.0
        %258 = vmatpush2.msra.mxu0 0.0
        %259 = vmatprep.mubr.f32.mxu0 0.0
        %260 = vmatmul.mubr.f32.gmra.mxu0 %v184
        %v261 = vpop.f32.mrf.mxu0
        %v262 = vadd.f32 %v178, %v261
        %v263 = vpop.f32.mrf.mxu0
        %264 = vmatprep.mubr.f32.mxu0 0.0
        %265 = vmatmul.mubr.f32.gmra.mxu0 %v187
        %v266 = vpop.f32.mrf.mxu0
        %v267 = vadd.f32 %v179, %v266
        %v268 = vpop.f32.mrf.mxu0
        %269 = vmatprep.mubr.f32.mxu0 0.0
        %270 = vmatmul.mubr.f32.gmra.mxu0 %v190
        %v271 = vpop.f32.mrf.mxu0
        %v272 = vadd.f32 %v180, %v271
        %v273 = vpop.f32.mrf.mxu0
        %274 = vmatprep.mubr.f32.mxu0 0.0
        %275 = vmatmul.mubr.f32.gmra.mxu0 %v193
        %v276 = vpop.f32.mrf.mxu0
        %v277 = vadd.f32 %v181, %v276
        %v278 = vpop.f32.mrf.mxu0
        %279 = vdwg.mxu0
        %280 = vst [vmem:[%s164] sm:$0xff] %v262
        %281 = vst [vmem:[%s164 + $0x8] sm:$0xff] %v267
        %282 = vst [vmem:[%s164 + $0x10] sm:$0xff] %v272
        %283 = vst [vmem:[%s164 + $0x18] sm:$0xff] %v277
        %s284 = sand.u32 %s93, 1
        %s285 = scalar_lea.sflag [#allocation3], %s284
        %s286 = sand.u32 %s93, 1
        %s287 = smul.addr %s286, 32
        %s288 = scalar_lea.vmem [#allocation2], %s287
        // Predicated region
        $region33: #{tpu_custom_call.1} parent=31 // pred_check
          %p289 = pneg %p103
        $region34: #{tpu_custom_call.1} parent=31 // pred_check_branch
          %291 = sbr.rel (%p289) target = $region36
        $region35: #{tpu_custom_call.1} parent=31 // pred_region
          %s292 = smul.u32 4, %s17
          %s294 = ssub.s32 512, 512
          %295 = vsyncadd %s285, %s294
          %s296 = smul.addr %s292, 128
          %s297 = scalar_lea.hbm %s3, %s296
          %s298 = sshll.u32 %s288, 4
          %s299 = int_to_ptr.vmem [resolvable:$true] %s298
          %304 = dma.vmem_to_hbm [thread:$0]  %s299, 512, %s297, %s285, 128, 128, 8
        $region36: #{tpu_custom_call.1} parent=31 // pred_fallthru
          _
      $region32: #{tpu_custom_call.1} parent=5 // pred_fallthru
        _
      %p305 = scmp.le.s32.totalorder 2, %s12
      // Predicated region
      $region37: #{tpu_custom_call.1} parent=5 // pred_check
        %p306 = pneg %p305
      $region38: #{tpu_custom_call.1} parent=5 // pred_check_branch
        %308 = sbr.rel (%p306) target = $region40
      $region39: #{tpu_custom_call.1} parent=5 // pred_region
        %s309 = ssub.s32 %s12, 2
        // Predicated region
        $region41: #{tpu_custom_call.1} parent=39 // pred_check
          %p310 = pneg %p109
        $region42: #{tpu_custom_call.1} parent=39 // pred_check_branch
          %312 = sbr.rel (%p310) target = $region44
        $region43: #{tpu_custom_call.1} parent=39 // pred_region
          %s313 = sand.u32 %s94, 1
          %s314 = scalar_lea.sflag [#allocation3], %s313
          %s315 = sand.u32 %s94, 1
          %s316 = smul.addr %s315, 32
          %s317 = scalar_lea.vmem [#allocation2], %s316
          %318 = dma.done %s314, 512
        $region44: #{tpu_custom_call.1} parent=39 // pred_fallthru
          _
      $region40: #{tpu_custom_call.1} parent=5 // pred_fallthru
        _
    $region6: #{tpu_custom_call.1} parent=1 // loop_footer
      %s16 = sadd.s32 1, %s12
    $region7: #{tpu_custom_call.1} parent=1 // loop_footer_branch
      %11 = sbr.rel target = $region3
    $region8: #{tpu_custom_call.1} parent=1 // loop_exit
      _
    %319 = vsyncpa [#allocation3], 1
    %s320 = scalar_lea.sflag [#allocation3], 1
    %321 = vsyncpa %s320, 1

</llo_original>
